<compile_context>
chip_gen: v7x
topology: tpu7x:2x2x1
jax: 0.10.0
libtpu: 0.0.40
codegen_flags: <defaults>
</compile_context>

<pallas_src>
import math

import jax
import jax.numpy as jnp
from jax.experimental import pallas as pl
from jax.experimental.pallas import tpu as pltpu


# ----------------------------------------------------------------------------
# Kernel
# ----------------------------------------------------------------------------
def rope_kernel(cos_ref, ssin_ref, q_ref, k_ref, qo_ref, ko_ref):
    # cos_ref / ssin_ref : (R_TILE, 128) f32 table blocks (row-indexed only)
    # q_ref / k_ref / qo_ref / ko_ref : (GU, R_TILE, 128) per-step blocks
    gu = q_ref.shape[0]
    L = q_ref.shape[-1]                       # 128 lanes

    cos = cos_ref[...]                        # (R_TILE, 128)
    ssin = ssin_ref[...]                      # -sin on even lanes, +sin on odd
    lane = jax.lax.broadcasted_iota(jnp.int32, cos.shape, 1)
    even = (lane % 2) == 0                    # lane parity == feature-pair parity

    def rotate(x):
        x = x.astype(jnp.float32)
        # Pairwise partner via two XLU lane rotations + one select.  Row-edge
        # wrap-around values are never selected (lane 0 is even -> takes x[l+1],
        # lane 127 is odd -> takes x[l-1]).
        x_next = pltpu.roll(x, shift=L - 1, axis=1)   # x[l+1]
        x_prev = pltpu.roll(x, shift=1, axis=1)       # x[l-1]
        x_swap = jnp.where(even, x_next, x_prev)
        return x * cos + x_swap * ssin

    def body(g, carry):
        qo_ref[g] = rotate(q_ref[g]).astype(qo_ref.dtype)
        ko_ref[g] = rotate(k_ref[g]).astype(ko_ref.dtype)
        return carry

    jax.lax.fori_loop(0, gu, body, 0, unroll=True)


# ----------------------------------------------------------------------------
# Trace-time helpers (plain Python)
# ----------------------------------------------------------------------------
def _divisors(n):
    return [d for d in range(1, n + 1) if n % d == 0]


def _tpu_params():
    """(vmem_capacity_bytes, num_tensorcores) with conservative fallbacks."""
    vmem_cap = 64 << 20                       # conservative (v7x-like) default
    cores = None
    try:
        info = pltpu.get_tpu_info()
        vmem_cap = int(getattr(info, "vmem_capacity_bytes", vmem_cap))
        for name in ("num_cores", "num_tensorcores", "tensorcore_count", "core_count"):
            val = getattr(info, name, None)
            if val:
                cores = int(val)
                break
    except Exception:
        pass
    if cores is None:
        # v7x (64 MiB VMEM per TensorCore) has 2 TCs/chip; v5e/v6e have 1.
        cores = 2 if vmem_cap <= (64 << 20) else 1
    return vmem_cap, cores


def _choose_tiles(nu, ru, itemsize, target_bytes, min_steps):
    """Pick (units-per-block, rows-per-block) so one q block is ~target_bytes,
    the row tile obeys the (8, 128) layout rule (multiple of 8 or full extent),
    and the grid keeps >= min_steps steps so multi-TC chips get parallel work."""
    row_bytes = 128 * itemsize
    r_cands = [d for d in _divisors(ru) if d % 8 == 0 or d == ru]
    r_cap = max(1, min(2048, target_bytes // row_bytes))
    fitting = [d for d in r_cands if d <= r_cap]
    r_tile = max(fitting) if fitting else min(r_cands)
    g_cap = max(1, target_bytes // (r_tile * row_bytes))
    gu = max(d for d in _divisors(nu) if d <= min(g_cap, 8))
    while (ru // r_tile) * (nu // gu) < min_steps:
        if gu > 1:
            gu = max(d for d in _divisors(nu) if d < gu)
        else:
            smaller = [d for d in r_cands if d < r_tile]
            if not smaller:
                break
            r_tile = max(smaller)
    return gu, r_tile


# ----------------------------------------------------------------------------
# Wrapper
# ----------------------------------------------------------------------------
def rope_forward(q, k, rope_theta):
    B, H, T, D = q.shape
    assert k.shape == q.shape, "q and k must have the same shape."
    assert D % 2 == 0, "RoPE operates on pairs of features, so D must be even."
    BH = B * H

    # Smallest number of heads whose flattened payload is a whole number of
    # 128-lane rows (lane-dense layout -> full-width stores for any D).
    g0 = 128 // math.gcd(T * D, 128)
    if BH % g0 != 0:
        # TODO(synk): lane-dense repack needs g0 | B*H; fall back to plain XLA
        # for this rare corner rather than emitting masked partial stores.
        return _rope_reference(q, k, rope_theta)

    NU = BH // g0                             # lane-aligned "units"
    RU = (g0 * T * D) // 128                  # 128-lane rows per unit

    # ---- tables (f32, built once outside the kernel — no in-kernel EUP work) --
    inv_freq = 1.0 / (rope_theta ** (jnp.arange(0, D, 2, dtype=jnp.float32) / D))
    ang = jnp.arange(T, dtype=jnp.float32)[:, None] * jnp.repeat(inv_freq, 2)[None, :]
    cos = jnp.cos(ang)                                            # (T, D)
    sgn = jnp.where((jnp.arange(D) % 2) == 0, -1.0, 1.0)
    ssin = jnp.sin(ang) * sgn                 # -sin at even (pair-first) d, +sin at odd
    cos_t = jnp.tile(cos.reshape(-1), g0).reshape(RU, 128)
    ssin_t = jnp.tile(ssin.reshape(-1), g0).reshape(RU, 128)

    qf = q.reshape(NU, RU, 128)
    kf = k.reshape(NU, RU, 128)

    # ---- block sizing / VMEM budget (per chip generation) ---------------------
    vmem_cap, cores = _tpu_params()
    target_block_bytes = 4 << 20              # ~16 MiB HBM traffic per grid step
    gu, r_tile = _choose_tiles(NU, RU, q.dtype.itemsize, target_block_bytes,
                               min_steps=cores)
    blk_bytes = gu * r_tile * 128 * q.dtype.itemsize
    tbl_bytes = r_tile * 128 * 4
    # 4 q/k streams x 2 pipeline buffers + 2 small table blocks x 2 buffers + temps.
    footprint = 4 * 2 * blk_bytes + 2 * 2 * tbl_bytes + (4 << 20)
    vmem_limit = min(int(vmem_cap * 0.75), 96 << 20)      # ~48 MiB v7x, ~96 MiB v5e/v6e
    vmem_limit = max(vmem_limit, min(footprint, int(vmem_cap * 0.9)))

    # Row axis OUTER, unit-group axis INNER: table blocks (indexed only by r)
    # are re-fetched only when r changes -> read from HBM exactly once.
    grid = (RU // r_tile, NU // gu)

    qk_spec = pl.BlockSpec((gu, r_tile, 128), lambda r, u: (u, r, 0))
    tbl_spec = pl.BlockSpec((r_tile, 128), lambda r, u: (r, 0))

    qo, ko = pl.pallas_call(
        rope_kernel,
        out_shape=(jax.ShapeDtypeStruct((NU, RU, 128), q.dtype),
                   jax.ShapeDtypeStruct((NU, RU, 128), k.dtype)),
        grid_spec=pltpu.PrefetchScalarGridSpec(
            num_scalar_prefetch=0,
            grid=grid,
            in_specs=[tbl_spec, tbl_spec, qk_spec, qk_spec],
            out_specs=[qk_spec, qk_spec],
        ),
        compiler_params=pltpu.CompilerParams(
            dimension_semantics=("parallel", "parallel"),
            vmem_limit_bytes=vmem_limit,
        ),
        input_output_aliases={2: 0, 3: 1},    # rotate q/k in place (no new HBM)
    )(cos_t, ssin_t, qf, kf)

    return qo.reshape(B, H, T, D), ko.reshape(B, H, T, D)


def _rope_reference(q, k, rope_theta):
    """Pure-JAX port of the PyTorch module (correctness oracle / rare fallback)."""
    B, H, T, D = q.shape
    inv_freq = 1.0 / (rope_theta ** (jnp.arange(0, D, 2, dtype=jnp.float32) / D))
    pos = jnp.arange(T, dtype=jnp.float32)
    freqs = pos[:, None] * inv_freq[None, :]                   # (T, D/2)
    emb = jnp.stack((freqs, freqs), axis=-1).reshape(T, D)     # interleaved
    cos = jnp.cos(emb)
    sin = jnp.sin(emb)

    def swap_negate_pairwise(x):
        xe = x[..., 0::2]
        xo = x[..., 1::2]
        return jnp.stack((-xo, xe), axis=-1).reshape(x.shape)

    q_rope = q * cos + swap_negate_pairwise(q) * sin
    k_rope = k * cos + swap_negate_pairwise(k) * sin
    return q_rope, k_rope


if __name__ == "__main__":
    rope_theta = 10000.0
    rope_jit = jax.jit(rope_forward, static_argnums=(2,))

    # Case 1: f32, D=64 (lane-dense repack, g0 == 1).
    B, H, T, D = 2, 2, 16, 64
    kq, kk = jax.random.split(jax.random.PRNGKey(0))
    q = jax.random.normal(kq, (B, H, T, D), dtype=jnp.float32)
    k = jax.random.normal(kk, (B, H, T, D), dtype=jnp.float32)
    q_rope, k_rope = rope_jit(q, k, rope_theta)
    jax.block_until_ready((q_rope, k_rope))
    q_ref, k_ref = _rope_reference(q, k, rope_theta)
    assert jnp.allclose(q_rope, q_ref, atol=1e-5, rtol=1e-5), "q mismatch (f32)"
    assert jnp.allclose(k_rope, k_ref, atol=1e-5, rtol=1e-5), "k mismatch (f32)"

    # Case 2: bf16 I/O, D=128 (f32 compute inside the kernel).
    B, H, T, D = 2, 4, 32, 128
    kq, kk = jax.random.split(jax.random.PRNGKey(1))
    qb = jax.random.normal(kq, (B, H, T, D), dtype=jnp.float32).astype(jnp.bfloat16)
    kb = jax.random.normal(kk, (B, H, T, D), dtype=jnp.float32).astype(jnp.bfloat16)
    qo, ko = rope_jit(qb, kb, rope_theta)
    jax.block_until_ready((qo, ko))
    qr, kr = _rope_reference(qb.astype(jnp.float32), kb.astype(jnp.float32), rope_theta)
    assert jnp.allclose(qo.astype(jnp.float32), qr, atol=2e-2, rtol=2e-2), "q mismatch (bf16)"
    assert jnp.allclose(ko.astype(jnp.float32), kr, atol=2e-2, rtol=2e-2), "k mismatch (bf16)"

    # Case 3: tiny head_dim with T*D % 128 != 0 (g0 = 4 heads packed per 128-lane row;
    # exercises the no-masked-store layout for small D).
    B, H, T, D = 2, 2, 8, 4
    kq, kk = jax.random.split(jax.random.PRNGKey(2))
    qs = jax.random.normal(kq, (B, H, T, D), dtype=jnp.float32)
    ks = jax.random.normal(kk, (B, H, T, D), dtype=jnp.float32)
    qso, kso = rope_jit(qs, ks, rope_theta)
    jax.block_until_ready((qso, kso))
    qsr, ksr = _rope_reference(qs, ks, rope_theta)
    assert jnp.allclose(qso, qsr, atol=1e-5, rtol=1e-5), "q mismatch (small D)"
    assert jnp.allclose(kso, ksr, atol=1e-5, rtol=1e-5), "k mismatch (small D)"

    print("KERNEL_OK")
</pallas_src>

<mosaic_0001>
module attributes {stable_mosaic.version = 11 : i64} {
  func.func @rope_kernel(%arg0: i32, %arg1: i32, %arg2: memref<8x128xf32, #tpu.memory_space<vmem>>, %arg3: memref<8x128xf32, #tpu.memory_space<vmem>>, %arg4: memref<2x8x128xf32, #tpu.memory_space<vmem>>, %arg5: memref<2x8x128xf32, #tpu.memory_space<vmem>>, %arg6: memref<2x8x128xf32, #tpu.memory_space<vmem>>, %arg7: memref<2x8x128xf32, #tpu.memory_space<vmem>>) attributes {dimension_semantics = [#tpu.dimension_semantics<parallel>, #tpu.dimension_semantics<parallel>], iteration_bounds = array<i64: 1, 2>, scalar_prefetch = 0 : i64, scratch_operands = 0 : i64, tpu.core_type = #tpu.core_type<tc>, window_params = [{transform_indices = @transform_0, window_bounds = array<i64: 8, 128>}, {transform_indices = @transform_1, window_bounds = array<i64: 8, 128>}, {transform_indices = @transform_2, window_bounds = array<i64: 2, 8, 128>}, {transform_indices = @transform_3, window_bounds = array<i64: 2, 8, 128>}, {transform_indices = @transform_4, window_bounds = array<i64: 2, 8, 128>}, {transform_indices = @transform_5, window_bounds = array<i64: 2, 8, 128>}]} {
    %c0 = arith.constant 0 : index
    %c0_0 = arith.constant 0 : index
    %0 = vector.load %arg2[%c0, %c0_0] : memref<8x128xf32, #tpu.memory_space<vmem>>, vector<8x128xf32>
    %c0_1 = arith.constant 0 : index
    %c0_2 = arith.constant 0 : index
    %1 = vector.load %arg3[%c0_1, %c0_2] : memref<8x128xf32, #tpu.memory_space<vmem>>, vector<8x128xf32>
    %2 = tpu.iota {dimensions = array<i32: 1>} : vector<8x128xi32>
    %c2_i32 = arith.constant 2 : i32
    %c0_i32 = arith.constant 0 : i32
    %3 = arith.cmpi eq, %c2_i32, %c0_i32 : i32
    %c1_i32 = arith.constant 1 : i32
    %4 = arith.select %3, %c1_i32, %c2_i32 : i32
    %5 = vector.broadcast %4 : i32 to vector<8x128xi32>
    %6 = arith.remsi %2, %5 : vector<8x128xi32>
    %c0_i32_3 = arith.constant 0 : i32
    %7 = vector.broadcast %c0_i32_3 : i32 to vector<8x128xi32>
    %8 = arith.cmpi ne, %6, %7 : vector<8x128xi32>
    %c0_i32_4 = arith.constant 0 : i32
    %9 = vector.broadcast %c0_i32_4 : i32 to vector<8x128xi32>
    %10 = arith.cmpi slt, %6, %9 : vector<8x128xi32>
    %c0_i32_5 = arith.constant 0 : i32
    %11 = arith.cmpi slt, %4, %c0_i32_5 : i32
    %12 = vector.broadcast %11 : i1 to vector<8x128xi1>
    %13 = vector.broadcast %12 : vector<8x128xi1> to vector<8x128xi1>
    %14 = arith.xori %10, %13 : vector<8x128xi1>
    %15 = arith.andi %14, %8 : vector<8x128xi1>
    %16 = vector.broadcast %4 : i32 to vector<8x128xi32>
    %17 = arith.addi %6, %16 : vector<8x128xi32>
    %18 = arith.select %15, %17, %6 : vector<8x128xi1>, vector<8x128xi32>
    %c0_i32_6 = arith.constant 0 : i32
    %19 = vector.broadcast %c0_i32_6 : i32 to vector<8x128xi32>
    %20 = arith.cmpi eq, %18, %19 : vector<8x128xi32>
    %c0_i32_7 = arith.constant 0 : i32
    %21 = arith.index_cast %c0_i32_7 : i32 to index
    %c0_8 = arith.constant 0 : index
    %c0_9 = arith.constant 0 : index
    %22 = vector.load %arg4[%21, %c0_8, %c0_9] : memref<2x8x128xf32, #tpu.memory_space<vmem>>, vector<1x8x128xf32>
    %23 = vector.shape_cast %22 : vector<1x8x128xf32> to vector<8x128xf32>
    %c127_i32 = arith.constant 127 : i32
    %24 = tpu.dynamic_rotate %23 by %c127_i32 dim 1 : vector<8x128xf32>, i32 -> vector<8x128xf32>
    %c1_i32_10 = arith.constant 1 : i32
    %25 = tpu.dynamic_rotate %23 by %c1_i32_10 dim 1 : vector<8x128xf32>, i32 -> vector<8x128xf32>
    %26 = arith.select %20, %24, %25 : vector<8x128xi1>, vector<8x128xf32>
    %27 = arith.mulf %23, %0 : vector<8x128xf32>
    %28 = arith.mulf %26, %1 : vector<8x128xf32>
    %29 = arith.addf %27, %28 : vector<8x128xf32>
    %30 = arith.index_cast %c0_i32_7 : i32 to index
    %c0_11 = arith.constant 0 : index
    %c0_12 = arith.constant 0 : index
    %31 = vector.load %arg6[%30, %c0_11, %c0_12] : memref<2x8x128xf32, #tpu.memory_space<vmem>>, vector<1x8x128xf32>
    %32 = vector.shape_cast %31 : vector<1x8x128xf32> to vector<8x128xf32>
    %33 = vector.shape_cast %29 : vector<8x128xf32> to vector<1x8x128xf32>
    tpu.vector_store %arg6[%30, %c0_11, %c0_12], %33 {strides = array<i32>} : memref<2x8x128xf32, #tpu.memory_space<vmem>>, vector<1x8x128xf32>,
    %34 = arith.index_cast %c0_i32_7 : i32 to index
    %c0_13 = arith.constant 0 : index
    %c0_14 = arith.constant 0 : index
    %35 = vector.load %arg5[%34, %c0_13, %c0_14] : memref<2x8x128xf32, #tpu.memory_space<vmem>>, vector<1x8x128xf32>
    %36 = vector.shape_cast %35 : vector<1x8x128xf32> to vector<8x128xf32>
    %c127_i32_15 = arith.constant 127 : i32
    %37 = tpu.dynamic_rotate %36 by %c127_i32_15 dim 1 : vector<8x128xf32>, i32 -> vector<8x128xf32>
    %c1_i32_16 = arith.constant 1 : i32
    %38 = tpu.dynamic_rotate %36 by %c1_i32_16 dim 1 : vector<8x128xf32>, i32 -> vector<8x128xf32>
    %39 = arith.select %20, %37, %38 : vector<8x128xi1>, vector<8x128xf32>
    %40 = arith.mulf %36, %0 : vector<8x128xf32>
    %41 = arith.mulf %39, %1 : vector<8x128xf32>
    %42 = arith.addf %40, %41 : vector<8x128xf32>
    %43 = arith.index_cast %c0_i32_7 : i32 to index
    %c0_17 = arith.constant 0 : index
    %c0_18 = arith.constant 0 : index
    %44 = vector.load %arg7[%43, %c0_17, %c0_18] : memref<2x8x128xf32, #tpu.memory_space<vmem>>, vector<1x8x128xf32>
    %45 = vector.shape_cast %44 : vector<1x8x128xf32> to vector<8x128xf32>
    %46 = vector.shape_cast %42 : vector<8x128xf32> to vector<1x8x128xf32>
    tpu.vector_store %arg7[%43, %c0_17, %c0_18], %46 {strides = array<i32>} : memref<2x8x128xf32, #tpu.memory_space<vmem>>, vector<1x8x128xf32>,
    %c1_i32_19 = arith.constant 1 : i32
    %47 = arith.index_cast %c1_i32_19 : i32 to index
    %c0_20 = arith.constant 0 : index
    %c0_21 = arith.constant 0 : index
    %48 = vector.load %arg4[%47, %c0_20, %c0_21] : memref<2x8x128xf32, #tpu.memory_space<vmem>>, vector<1x8x128xf32>
    %49 = vector.shape_cast %48 : vector<1x8x128xf32> to vector<8x128xf32>
    %c127_i32_22 = arith.constant 127 : i32
    %50 = tpu.dynamic_rotate %49 by %c127_i32_22 dim 1 : vector<8x128xf32>, i32 -> vector<8x128xf32>
    %c1_i32_23 = arith.constant 1 : i32
    %51 = tpu.dynamic_rotate %49 by %c1_i32_23 dim 1 : vector<8x128xf32>, i32 -> vector<8x128xf32>
    %52 = arith.select %20, %50, %51 : vector<8x128xi1>, vector<8x128xf32>
    %53 = arith.mulf %49, %0 : vector<8x128xf32>
    %54 = arith.mulf %52, %1 : vector<8x128xf32>
    %55 = arith.addf %53, %54 : vector<8x128xf32>
    %56 = arith.index_cast %c1_i32_19 : i32 to index
    %c0_24 = arith.constant 0 : index
    %c0_25 = arith.constant 0 : index
    %57 = vector.load %arg6[%56, %c0_24, %c0_25] : memref<2x8x128xf32, #tpu.memory_space<vmem>>, vector<1x8x128xf32>
    %58 = vector.shape_cast %57 : vector<1x8x128xf32> to vector<8x128xf32>
    %59 = vector.shape_cast %55 : vector<8x128xf32> to vector<1x8x128xf32>
    tpu.vector_store %arg6[%56, %c0_24, %c0_25], %59 {strides = array<i32>} : memref<2x8x128xf32, #tpu.memory_space<vmem>>, vector<1x8x128xf32>,
    %60 = arith.index_cast %c1_i32_19 : i32 to index
    %c0_26 = arith.constant 0 : index
    %c0_27 = arith.constant 0 : index
    %61 = vector.load %arg5[%60, %c0_26, %c0_27] : memref<2x8x128xf32, #tpu.memory_space<vmem>>, vector<1x8x128xf32>
    %62 = vector.shape_cast %61 : vector<1x8x128xf32> to vector<8x128xf32>
    %c127_i32_28 = arith.constant 127 : i32
    %63 = tpu.dynamic_rotate %62 by %c127_i32_28 dim 1 : vector<8x128xf32>, i32 -> vector<8x128xf32>
    %c1_i32_29 = arith.constant 1 : i32
    %64 = tpu.dynamic_rotate %62 by %c1_i32_29 dim 1 : vector<8x128xf32>, i32 -> vector<8x128xf32>
    %65 = arith.select %20, %63, %64 : vector<8x128xi1>, vector<8x128xf32>
    %66 = arith.mulf %62, %0 : vector<8x128xf32>
    %67 = arith.mulf %65, %1 : vector<8x128xf32>
    %68 = arith.addf %66, %67 : vector<8x128xf32>
    %69 = arith.index_cast %c1_i32_19 : i32 to index
    %c0_30 = arith.constant 0 : index
    %c0_31 = arith.constant 0 : index
    %70 = vector.load %arg7[%69, %c0_30, %c0_31] : memref<2x8x128xf32, #tpu.memory_space<vmem>>, vector<1x8x128xf32>
    %71 = vector.shape_cast %70 : vector<1x8x128xf32> to vector<8x128xf32>
    %72 = vector.shape_cast %68 : vector<8x128xf32> to vector<1x8x128xf32>
    tpu.vector_store %arg7[%69, %c0_30, %c0_31], %72 {strides = array<i32>} : memref<2x8x128xf32, #tpu.memory_space<vmem>>, vector<1x8x128xf32>,
    %c2_i32_32 = arith.constant 2 : i32
    return
  }
  func.func @transform_0(%arg0: i32, %arg1: i32) -> (i32, i32) {
    %c0_i32 = arith.constant 0 : i32
    %c0_i32_0 = arith.constant 0 : i32
    return %arg0, %c0_i32 : i32, i32
  }
  func.func @transform_1(%arg0: i32, %arg1: i32) -> (i32, i32) {
    %c0_i32 = arith.constant 0 : i32
    %c0_i32_0 = arith.constant 0 : i32
    return %arg0, %c0_i32 : i32, i32
  }
  func.func @transform_2(%arg0: i32, %arg1: i32) -> (i32, i32, i32) {
    %c0_i32 = arith.constant 0 : i32
    %c0_i32_0 = arith.constant 0 : i32
    return %arg1, %arg0, %c0_i32 : i32, i32, i32
  }
  func.func @transform_3(%arg0: i32, %arg1: i32) -> (i32, i32, i32) {
    %c0_i32 = arith.constant 0 : i32
    %c0_i32_0 = arith.constant 0 : i32
    return %arg1, %arg0, %c0_i32 : i32, i32, i32
  }
  func.func @transform_4(%arg0: i32, %arg1: i32) -> (i32, i32, i32) {
    %c0_i32 = arith.constant 0 : i32
    %c0_i32_0 = arith.constant 0 : i32
    return %arg1, %arg0, %c0_i32 : i32, i32, i32
  }
  func.func @transform_5(%arg0: i32, %arg1: i32) -> (i32, i32, i32) {
    %c0_i32 = arith.constant 0 : i32
    %c0_i32_0 = arith.constant 0 : i32
    return %arg1, %arg0, %c0_i32 : i32, i32, i32
  }
}

</mosaic_0001>

<llo_original>
// kernel: mul.19
$region0: #{mul.19}
  %s0 = inlined_call_operand.vmem [shape: f32[32,2], index: 0, kind: input, shape index: {}]
  %s1 = inlined_call_operand.vmem [shape: f32[64], index: 1, kind: output, shape index: {}]
  $region1: #{mul.19} parent=0
    #allocation0 [shape = 'u8[4096]{0}', space=vmem, size = 0x1000, scoped, tag = 'scoped mem for output reshape']
    %v2 = vld [vmem:[%s0] sm:$0x1]
    %vm3 = vcmask 15360
    %4 = vst.msk [vmem:[#allocation0] sm:$0x1] %vm3, %v2
    %s5 = scalar_lea.vmem %s0, 31
    %v6 = vld [vmem:[%s5] sm:$0x1]
    %7 = vrot.lane.b32.xlu0 %v6, 62
    %v8 = vpop.permute.xlu0 %7
    %vm9 = vcmask 523760
    %10 = vst.msk [vmem:[#allocation0] sm:$0x1] %vm9, %v8
    %s11 = scalar_lea.vmem %s0, 30
    %v12 = vld [vmem:[%s11] sm:$0x1]
    %13 = vrot.lane.b32.xlu0 %v12, 60
    %v14 = vpop.permute.xlu0 %13
    %vm15 = vcmask 507360
    %16 = vst.msk [vmem:[#allocation0] sm:$0x1] %vm15, %v14
    %s17 = scalar_lea.vmem %s0, 29
    %v18 = vld [vmem:[%s17] sm:$0x1]
    %19 = vrot.lane.b32.xlu0 %v18, 58
    %v20 = vpop.permute.xlu0 %19
    %vm21 = vcmask 490960
    %22 = vst.msk [vmem:[#allocation0] sm:$0x1] %vm21, %v20
    %s23 = scalar_lea.vmem %s0, 28
    %v24 = vld [vmem:[%s23] sm:$0x1]
    %25 = vrot.lane.b32.xlu0 %v24, 56
    %v26 = vpop.permute.xlu0 %25
    %vm27 = vcmask 474560
    %28 = vst.msk [vmem:[#allocation0] sm:$0x1] %vm27, %v26
    %s29 = scalar_lea.vmem %s0, 27
    %v30 = vld [vmem:[%s29] sm:$0x1]
    %31 = vrot.lane.b32.xlu0 %v30, 54
    %v32 = vpop.permute.xlu0 %31
    %vm33 = vcmask 458160
    %34 = vst.msk [vmem:[#allocation0] sm:$0x1] %vm33, %v32
    %s35 = scalar_lea.vmem %s0, 26
    %v36 = vld [vmem:[%s35] sm:$0x1]
    %37 = vrot.lane.b32.xlu0 %v36, 52
    %v38 = vpop.permute.xlu0 %37
    %vm39 = vcmask 441760
    %40 = vst.msk [vmem:[#allocation0] sm:$0x1] %vm39, %v38
    %s41 = scalar_lea.vmem %s0, 25
    %v42 = vld [vmem:[%s41] sm:$0x1]
    %43 = vrot.lane.b32.xlu0 %v42, 50
    %v44 = vpop.permute.xlu0 %43
    %vm45 = vcmask 425360
    %46 = vst.msk [vmem:[#allocation0] sm:$0x1] %vm45, %v44
    %s47 = scalar_lea.vmem %s0, 24
    %v48 = vld [vmem:[%s47] sm:$0x1]
    %49 = vrot.lane.b32.xlu0 %v48, 48
    %v50 = vpop.permute.xlu0 %49
    %vm51 = vcmask 408960
    %52 = vst.msk [vmem:[#allocation0] sm:$0x1] %vm51, %v50
    %s53 = scalar_lea.vmem %s0, 23
    %v54 = vld [vmem:[%s53] sm:$0x1]
    %55 = vrot.lane.b32.xlu0 %v54, 46
    %v56 = vpop.permute.xlu0 %55
    %vm57 = vcmask 392560
    %58 = vst.msk [vmem:[#allocation0] sm:$0x1] %vm57, %v56
    %s59 = scalar_lea.vmem %s0, 22
    %v60 = vld [vmem:[%s59] sm:$0x1]
    %61 = vrot.lane.b32.xlu0 %v60, 44
    %v62 = vpop.permute.xlu0 %61
    %vm63 = vcmask 376160
    %64 = vst.msk [vmem:[#allocation0] sm:$0x1] %vm63, %v62
    %s65 = scalar_lea.vmem %s0, 21
    %v66 = vld [vmem:[%s65] sm:$0x1]
    %67 = vrot.lane.b32.xlu0 %v66, 42
    %v68 = vpop.permute.xlu0 %67
    %vm69 = vcmask 359760
    %70 = vst.msk [vmem:[#allocation0] sm:$0x1] %vm69, %v68
    %s71 = scalar_lea.vmem %s0, 20
    %v72 = vld [vmem:[%s71] sm:$0x1]
    %73 = vrot.lane.b32.xlu0 %v72, 40
    %v74 = vpop.permute.xlu0 %73
    %vm75 = vcmask 343360
    %76 = vst.msk [vmem:[#allocation0] sm:$0x1] %vm75, %v74
    %s77 = scalar_lea.vmem %s0, 19
    %v78 = vld [vmem:[%s77] sm:$0x1]
    %79 = vrot.lane.b32.xlu0 %v78, 38
    %v80 = vpop.permute.xlu0 %79
    %vm81 = vcmask 326960
    %82 = vst.msk [vmem:[#allocation0] sm:$0x1] %vm81, %v80
    %s83 = scalar_lea.vmem %s0, 18
    %v84 = vld [vmem:[%s83] sm:$0x1]
    %85 = vrot.lane.b32.xlu0 %v84, 36
    %v86 = vpop.permute.xlu0 %85
    %vm87 = vcmask 310560
    %88 = vst.msk [vmem:[#allocation0] sm:$0x1] %vm87, %v86
    %s89 = scalar_lea.vmem %s0, 17
    %v90 = vld [vmem:[%s89] sm:$0x1]
    %91 = vrot.lane.b32.xlu0 %v90, 34
    %v92 = vpop.permute.xlu0 %91
    %vm93 = vcmask 294160
    %94 = vst.msk [vmem:[#allocation0] sm:$0x1] %vm93, %v92
    %s95 = scalar_lea.vmem %s0, 16
    %v96 = vld [vmem:[%s95] sm:$0x1]
    %97 = vrot.lane.b32.xlu0 %v96, 32
    %v98 = vpop.permute.xlu0 %97
    %vm99 = vcmask 277760
    %100 = vst.msk [vmem:[#allocation0] sm:$0x1] %vm99, %v98
    %s101 = scalar_lea.vmem %s0, 15
    %v102 = vld [vmem:[%s101] sm:$0x1]
    %103 = vrot.lane.b32.xlu0 %v102, 30
    %v104 = vpop.permute.xlu0 %103
    %vm105 = vcmask 261360
    %106 = vst.msk [vmem:[#allocation0] sm:$0x1] %vm105, %v104
    %s107 = scalar_lea.vmem %s0, 14
    %v108 = vld [vmem:[%s107] sm:$0x1]
    %109 = vrot.lane.b32.xlu0 %v108, 28
    %v110 = vpop.permute.xlu0 %109
    %vm111 = vcmask 244960
    %112 = vst.msk [vmem:[#allocation0] sm:$0x1] %vm111, %v110
    %s113 = scalar_lea.vmem %s0, 13
    %v114 = vld [vmem:[%s113] sm:$0x1]
    %115 = vrot.lane.b32.xlu0 %v114, 26
    %v116 = vpop.permute.xlu0 %115
    %vm117 = vcmask 228560
    %118 = vst.msk [vmem:[#allocation0] sm:$0x1] %vm117, %v116
    %s119 = scalar_lea.vmem %s0, 12
    %v120 = vld [vmem:[%s119] sm:$0x1]
    %121 = vrot.lane.b32.xlu0 %v120, 24
    %v122 = vpop.permute.xlu0 %121
    %vm123 = vcmask 212160
    %124 = vst.msk [vmem:[#allocation0] sm:$0x1] %vm123, %v122
    %s125 = scalar_lea.vmem %s0, 11
    %v126 = vld [vmem:[%s125] sm:$0x1]
    %127 = vrot.lane.b32.xlu0 %v126, 22
    %v128 = vpop.permute.xlu0 %127
    %vm129 = vcmask 195760
    %130 = vst.msk [vmem:[#allocation0] sm:$0x1] %vm129, %v128
    %s131 = scalar_lea.vmem %s0, 10
    %v132 = vld [vmem:[%s131] sm:$0x1]
    %133 = vrot.lane.b32.xlu0 %v132, 20
    %v134 = vpop.permute.xlu0 %133
    %vm135 = vcmask 179360
    %136 = vst.msk [vmem:[#allocation0] sm:$0x1] %vm135, %v134
    %s137 = scalar_lea.vmem %s0, 9
    %v138 = vld [vmem:[%s137] sm:$0x1]
    %139 = vrot.lane.b32.xlu0 %v138, 18
    %v140 = vpop.permute.xlu0 %139
    %vm141 = vcmask 162960
    %142 = vst.msk [vmem:[#allocation0] sm:$0x1] %vm141, %v140
    %s143 = scalar_lea.vmem %s0, 8
    %v144 = vld [vmem:[%s143] sm:$0x1]
    %145 = vrot.lane.b32.xlu0 %v144, 16
    %v146 = vpop.permute.xlu0 %145
    %vm147 = vcmask 146560
    %148 = vst.msk [vmem:[#allocation0] sm:$0x1] %vm147, %v146
    %s149 = scalar_lea.vmem %s0, 7
    %v150 = vld [vmem:[%s149] sm:$0x1]
    %151 = vrot.lane.b32.xlu0 %v150, 14
    %v152 = vpop.permute.xlu0 %151
    %vm153 = vcmask 130160
    %154 = vst.msk [vmem:[#allocation0] sm:$0x1] %vm153, %v152
    %s155 = scalar_lea.vmem %s0, 6
    %v156 = vld [vmem:[%s155] sm:$0x1]
    %157 = vrot.lane.b32.xlu0 %v156, 12
    %v158 = vpop.permute.xlu0 %157
    %vm159 = vcmask 113760
    %160 = vst.msk [vmem:[#allocation0] sm:$0x1] %vm159, %v158
    %s161 = scalar_lea.vmem %s0, 5
    %v162 = vld [vmem:[%s161] sm:$0x1]
    %163 = vrot.lane.b32.xlu0 %v162, 10
    %v164 = vpop.permute.xlu0 %163
    %vm165 = vcmask 97360
    %166 = vst.msk [vmem:[#allocation0] sm:$0x1] %vm165, %v164
    %s167 = scalar_lea.vmem %s0, 4
    %v168 = vld [vmem:[%s167] sm:$0x1]
    %169 = vrot.lane.b32.xlu0 %v168, 8
    %v170 = vpop.permute.xlu0 %169
    %vm171 = vcmask 80960
    %172 = vst.msk [vmem:[#allocation0] sm:$0x1] %vm171, %v170
    %s173 = scalar_lea.vmem %s0, 3
    %v174 = vld [vmem:[%s173] sm:$0x1]
    %175 = vrot.lane.b32.xlu0 %v174, 6
    %v176 = vpop.permute.xlu0 %175
    %vm177 = vcmask 64560
    %178 = vst.msk [vmem:[#allocation0] sm:$0x1] %vm177, %v176
    %s179 = scalar_lea.vmem %s0, 2
    %v180 = vld [vmem:[%s179] sm:$0x1]
    %181 = vrot.lane.b32.xlu0 %v180, 4
    %v182 = vpop.permute.xlu0 %181
    %vm183 = vcmask 48160
    %184 = vst.msk [vmem:[#allocation0] sm:$0x1] %vm183, %v182
    %s185 = scalar_lea.vmem %s0, 1
    %v186 = vld [vmem:[%s185] sm:$0x1]
    %187 = vrot.lane.b32.xlu0 %v186, 2
    %v188 = vpop.permute.xlu0 %187
    %vm189 = vcmask 31760
    %190 = vst.msk [vmem:[#allocation0] sm:$0x1] %vm189, %v188
    %s192 = sshllo.u32 0, 1
    %v194 = vld [vmem:[#allocation0] sm:%s192]
    %s195 = sshllo.u32 0, 1
    %196 = vst [vmem:[%s1] sm:%s195] %v194

// kernel: rope_forward.1
$region0: #{rope_forward.1}
  #allocation0 [shape = 'u32[]', space=smem, size = 0x4, offset = 0x4, fixed_abs, tag = 'smem constant byte address 0x4 - core index']
  #allocation1 [shape = 'u32[144,128]{1,0:T(1,128)}', space=vmem, size = 0x12000, scoped, tag = 'internal scratch']
  %s0 = inlined_call_operand.vmem [shape: f32[8,128], index: 0, kind: input, shape index: {}]
  %s1 = inlined_call_operand.vmem [shape: f32[8,128], index: 1, kind: input, shape index: {}]
  %s2 = inlined_call_operand.vmem [shape: f32[4,8,128], index: 2, kind: input, shape index: {}, may-alias: {2,4}]
  %s3 = inlined_call_operand.vmem [shape: f32[4,8,128], index: 3, kind: input, shape index: {}, may-alias: {3,5}]
  %s4 = inlined_call_operand.vmem [shape: f32[4,8,128], index: 4, kind: output, shape index: {0}, may-alias: {2,4}]
  %s5 = inlined_call_operand.vmem [shape: f32[4,8,128], index: 5, kind: output, shape index: {1}, may-alias: {3,5}]
  %6 = xla_tuple %s4, %s5
  %s7 = sld [smem:[#allocation0]]
  $region57: #{rope_forward.1} parent=0
    _
  %s9 = ssub.s32 1, %s7
  %s10 = scalar_select 0, %s9, %s7
  loop: start=0, step=1, limit=4
  $region2: #{rope_forward.1} parent=0 // loop_pre_header
    _
  $region3: #{rope_forward.1} parent=0 // loop_header
    %s12 = sphi 0, %s16
    %p13 = scmp.ge.s32.totalorder %s12, 4
    %s19 = sphi 0, %s31
    %s20 = sphi 0, %s27
    %s21 = sphi 0, %s19
    %s22 = sphi 0, %s20
    %s23 = sphi 0, %s21
    %s24 = sphi 0, %s22
    %s34 = sphi 0, %s36
    %s37 = sphi 0, %s34
    %s38 = sphi 0, %s37
    %s54 = sphi 0, %s38
    %s60 = sphi 0, %s62
    %s63 = sphi 0, %s60
    %s64 = sphi 0, %s63
    %s80 = sphi 0, %s64
    %s88 = sphi 0, %s90
    %s91 = sphi 0, %s88
    %s92 = sphi 0, %s91
    %s108 = sphi 0, %s92
    %s116 = sphi 0, %s118
    %s119 = sphi 0, %s116
    %s120 = sphi 0, %s119
    %s136 = sphi 0, %s120
    %s144 = sphi 0, %s146
    %s147 = sphi 0, %s144
    %s148 = sphi 0, %s147
    %s164 = sphi 0, %s148
    %s172 = sphi 0, %s174
    %s175 = sphi 0, %s172
    %s176 = sphi 0, %s175
    %s192 = sphi 0, %s176
  $region4: #{rope_forward.1} parent=0 // loop_header_branch
    %15 = sbr.rel (%p13) target = $region8
  $region5: #{rope_forward.1} parent=0 // loop_body
    %s17 = ssub.s32 %s12, 1
    %s18 = ssub.s32 %s12, 2
    %s25 = sadd.s32 1, %s20
    %p26 = scmp.ge.s32.totalorder %s25, 2
    %s27 = scalar_select %p26, 0, %s25
    %s28 = sadd.s32 1, %s19
    %s29 = scalar_select %p26, %s28, %s19
    %p30 = scmp.ge.s32.totalorder %s29, 1
    %s31 = scalar_select %p30, 0, %s29
    %s32 = ssub.s32 %s19, %s31
    %p33 = scmp.eq.s32.totalorder %s32, 0
    %s35 = sadd.s32 %s34, 1
    %s36 = scalar_select %p33, %s34, %s35
    %p39 = pneg %p33
    %p40 = scmp.eq.s32.totalorder %s12, 1
    %p41 = por %p39, %p40
    %p42 = scmp.ne.s32.totalorder %s34, %s37
    %p43 = scmp.eq.s32.totalorder %s12, 0
    %p44 = por %p42, %p43
    %p45 = scmp.ne.s32.totalorder %s34, %s37
    %p46 = scmp.eq.s32.totalorder %s17, 1
    %p47 = por %p45, %p46
    %p48 = scmp.ne.s32.totalorder %s37, %s38
    %p49 = scmp.eq.s32.totalorder %s17, 0
    %p50 = por %p48, %p49
    %p51 = scmp.ne.s32.totalorder %s37, %s38
    %p52 = scmp.eq.s32.totalorder %s18, 1
    %p53 = por %p51, %p52
    %p55 = scmp.ne.s32.totalorder %s38, %s54
    %p56 = scmp.eq.s32.totalorder %s18, 0
    %p57 = por %p55, %p56
    %s58 = ssub.s32 %s19, %s31
    %p59 = scmp.eq.s32.totalorder %s58, 0
    %s61 = sadd.s32 %s60, 1
    %s62 = scalar_select %p59, %s60, %s61
    %p65 = pneg %p59
    %p66 = scmp.eq.s32.totalorder %s12, 1
    %p67 = por %p65, %p66
    %p68 = scmp.ne.s32.totalorder %s60, %s63
    %p69 = scmp.eq.s32.totalorder %s12, 0
    %p70 = por %p68, %p69
    %p71 = scmp.ne.s32.totalorder %s60, %s63
    %p72 = scmp.eq.s32.totalorder %s17, 1
    %p73 = por %p71, %p72
    %p74 = scmp.ne.s32.totalorder %s63, %s64
    %p75 = scmp.eq.s32.totalorder %s17, 0
    %p76 = por %p74, %p75
    %p77 = scmp.ne.s32.totalorder %s63, %s64
    %p78 = scmp.eq.s32.totalorder %s18, 1
    %p79 = por %p77, %p78
    %p81 = scmp.ne.s32.totalorder %s64, %s80
    %p82 = scmp.eq.s32.totalorder %s18, 0
    %p83 = por %p81, %p82
    %s84 = ssub.s32 %s20, %s27
    %s85 = ssub.s32 %s19, %s31
    %s86 = sor.u32 %s84, %s85
    %p87 = scmp.eq.s32.totalorder %s86, 0
    %s89 = sadd.s32 %s88, 1
    %s90 = scalar_select %p87, %s88, %s89
    %p93 = pneg %p87
    %p94 = scmp.eq.s32.totalorder %s12, 1
    %p95 = por %p93, %p94
    %p96 = scmp.ne.s32.totalorder %s88, %s91
    %p97 = scmp.eq.s32.totalorder %s12, 0
    %p98 = por %p96, %p97
    %p99 = scmp.ne.s32.totalorder %s88, %s91
    %p100 = scmp.eq.s32.totalorder %s17, 1
    %p101 = por %p99, %p100
    %p102 = scmp.ne.s32.totalorder %s91, %s92
    %p103 = scmp.eq.s32.totalorder %s17, 0
    %p104 = por %p102, %p103
    %p105 = scmp.ne.s32.totalorder %s91, %s92
    %p106 = scmp.eq.s32.totalorder %s18, 1
    %p107 = por %p105, %p106
    %p109 = scmp.ne.s32.totalorder %s92, %s108
    %p110 = scmp.eq.s32.totalorder %s18, 0
    %p111 = por %p109, %p110
    %s112 = ssub.s32 %s20, %s27
    %s113 = ssub.s32 %s19, %s31
    %s114 = sor.u32 %s112, %s113
    %p115 = scmp.eq.s32.totalorder %s114, 0
    %s117 = sadd.s32 %s116, 1
    %s118 = scalar_select %p115, %s116, %s117
    %p121 = pneg %p115
    %p122 = scmp.eq.s32.totalorder %s12, 1
    %p123 = por %p121, %p122
    %p124 = scmp.ne.s32.totalorder %s116, %s119
    %p125 = scmp.eq.s32.totalorder %s12, 0
    %p126 = por %p124, %p125
    %p127 = scmp.ne.s32.totalorder %s116, %s119
    %p128 = scmp.eq.s32.totalorder %s17, 1
    %p129 = por %p127, %p128
    %p130 = scmp.ne.s32.totalorder %s119, %s120
    %p131 = scmp.eq.s32.totalorder %s17, 0
    %p132 = por %p130, %p131
    %p133 = scmp.ne.s32.totalorder %s119, %s120
    %p134 = scmp.eq.s32.totalorder %s18, 1
    %p135 = por %p133, %p134
    %p137 = scmp.ne.s32.totalorder %s120, %s136
    %p138 = scmp.eq.s32.totalorder %s18, 0
    %p139 = por %p137, %p138
    %s140 = ssub.s32 %s20, %s27
    %s141 = ssub.s32 %s19, %s31
    %s142 = sor.u32 %s140, %s141
    %p143 = scmp.eq.s32.totalorder %s142, 0
    %s145 = sadd.s32 %s144, 1
    %s146 = scalar_select %p143, %s144, %s145
    %p149 = pneg %p143
    %p150 = scmp.eq.s32.totalorder %s12, 1
    %p151 = por %p149, %p150
    %p152 = scmp.ne.s32.totalorder %s144, %s147
    %p153 = scmp.eq.s32.totalorder %s12, 0
    %p154 = por %p152, %p153
    %p155 = scmp.ne.s32.totalorder %s144, %s147
    %p156 = scmp.eq.s32.totalorder %s17, 1
    %p157 = por %p155, %p156
    %p158 = scmp.ne.s32.totalorder %s147, %s148
    %p159 = scmp.eq.s32.totalorder %s17, 0
    %p160 = por %p158, %p159
    %p161 = scmp.ne.s32.totalorder %s147, %s148
    %p162 = scmp.eq.s32.totalorder %s18, 1
    %p163 = por %p161, %p162
    %p165 = scmp.ne.s32.totalorder %s148, %s164
    %p166 = scmp.eq.s32.totalorder %s18, 0
    %p167 = por %p165, %p166
    %s168 = ssub.s32 %s20, %s27
    %s169 = ssub.s32 %s19, %s31
    %s170 = sor.u32 %s168, %s169
    %p171 = scmp.eq.s32.totalorder %s170, 0
    %s173 = sadd.s32 %s172, 1
    %s174 = scalar_select %p171, %s172, %s173
    %p177 = pneg %p171
    %p178 = scmp.eq.s32.totalorder %s12, 1
    %p179 = por %p177, %p178
    %p180 = scmp.ne.s32.totalorder %s172, %s175
    %p181 = scmp.eq.s32.totalorder %s12, 0
    %p182 = por %p180, %p181
    %p183 = scmp.ne.s32.totalorder %s172, %s175
    %p184 = scmp.eq.s32.totalorder %s17, 1
    %p185 = por %p183, %p184
    %p186 = scmp.ne.s32.totalorder %s175, %s176
    %p187 = scmp.eq.s32.totalorder %s17, 0
    %p188 = por %p186, %p187
    %p189 = scmp.ne.s32.totalorder %s175, %s176
    %p190 = scmp.eq.s32.totalorder %s18, 1
    %p191 = por %p189, %p190
    %p193 = scmp.ne.s32.totalorder %s176, %s192
    %p194 = scmp.eq.s32.totalorder %s18, 0
    %p195 = por %p193, %p194
    %p196 = scmp.le.s32.totalorder 1, %s12
    %p197 = scmp.lt.s32.totalorder %s12, 3
    %p198 = pnand %p196, %p197
    %p199 = pneg %p198
    // Predicated region
    $region9: #{rope_forward.1} parent=5 // pred_check
      _
    $region10: #{rope_forward.1} parent=5 // pred_check_branch
      %201 = sbr.rel (%p198) target = $region12
    $region11: #{rope_forward.1} parent=5 // pred_region
      %s202 = ssub.s32 %s12, 1
      // Predicated region
      $region13: #{rope_forward.1} parent=11 // pred_check
        %p203 = pneg %p50
      $region14: #{rope_forward.1} parent=11 // pred_check_branch
        %205 = sbr.rel (%p203) target = $region16
      $region15: #{rope_forward.1} parent=11 // pred_region
        %p206 = scmp.lt.s32.totalorder %s21, 0
        %s207 = scalar_select %p206, %s21, 0
        %s208 = smul.addr %s207, 8
        %s209 = scalar_lea.vmem %s0, %s208
      $region16: #{rope_forward.1} parent=11 // pred_fallthru
        _
      // Predicated region
      $region17: #{rope_forward.1} parent=11 // pred_check
        %p210 = pneg %p76
      $region18: #{rope_forward.1} parent=11 // pred_check_branch
        %212 = sbr.rel (%p210) target = $region20
      $region19: #{rope_forward.1} parent=11 // pred_region
        %p213 = scmp.lt.s32.totalorder %s21, 0
        %s214 = scalar_select %p213, %s21, 0
        %s215 = smul.addr %s214, 8
        %s216 = scalar_lea.vmem %s1, %s215
      $region20: #{rope_forward.1} parent=11 // pred_fallthru
        _
    $region12: #{rope_forward.1} parent=5 // pred_fallthru
      _
    %p217 = scmp.lt.s32.totalorder %s12, 2
    // Predicated region
    $region21: #{rope_forward.1} parent=5 // pred_check
      %p218 = pneg %p217
    $region22: #{rope_forward.1} parent=5 // pred_check_branch
      %220 = sbr.rel (%p218) target = $region24
    $region23: #{rope_forward.1} parent=5 // pred_region
      // Predicated region
      $region25: #{rope_forward.1} parent=23 // pred_check
        %p221 = pneg %p98
      $region26: #{rope_forward.1} parent=23 // pred_check_branch
        %223 = sbr.rel (%p221) target = $region28
      $region27: #{rope_forward.1} parent=23 // pred_region
        %s224 = smul.u32 2, %s20
        %p225 = scmp.lt.s32.totalorder %s224, 3
        %s226 = scalar_select %p225, %s224, 3
        %p227 = scmp.lt.s32.totalorder %s19, 0
        %s228 = scalar_select %p227, %s19, 0
        %s229 = sadd.s32 %s228, %s226
        %s230 = smul.addr %s229, 8
        %s231 = scalar_lea.vmem %s2, %s230
        %s232 = smul.u32 2, %s20
      $region28: #{rope_forward.1} parent=23 // pred_fallthru
        _
      // Predicated region
      $region29: #{rope_forward.1} parent=23 // pred_check
        %p233 = pneg %p126
      $region30: #{rope_forward.1} parent=23 // pred_check_branch
        %235 = sbr.rel (%p233) target = $region32
      $region31: #{rope_forward.1} parent=23 // pred_region
        %s236 = smul.u32 2, %s20
        %p237 = scmp.lt.s32.totalorder %s236, 3
        %s238 = scalar_select %p237, %s236, 3
        %p239 = scmp.lt.s32.totalorder %s19, 0
        %s240 = scalar_select %p239, %s19, 0
        %s241 = sadd.s32 %s240, %s238
        %s242 = smul.addr %s241, 8
        %s243 = scalar_lea.vmem %s3, %s242
        %s244 = smul.u32 2, %s20
      $region32: #{rope_forward.1} parent=23 // pred_fallthru
        _
    $region24: #{rope_forward.1} parent=5 // pred_fallthru
      _
    %p245 = scmp.le.s32.totalorder 1, %s12
    %p246 = scmp.lt.s32.totalorder %s12, 3
    %p247 = pnand %p245, %p246
    %p248 = pneg %p247
    // Predicated region
    $region33: #{rope_forward.1} parent=5 // pred_check
      _
    $region34: #{rope_forward.1} parent=5 // pred_check_branch
      %250 = sbr.rel (%p247) target = $region36
    $region35: #{rope_forward.1} parent=5 // pred_region
      %s251 = ssub.s32 %s12, 1
      %p252 = scmp.lt.s32.totalorder %s21, 0
      %s253 = scalar_select %p252, %s21, 0
      %s254 = smul.addr %s253, 8
      %s255 = scalar_lea.vmem %s0, %s254
      %p256 = pneg %p50
      %p257 = pneg %p47
      %p258 = scmp.lt.s32.totalorder %s21, 0
      %s259 = scalar_select %p258, %s21, 0
      %s260 = smul.addr %s259, 8
      %s261 = scalar_lea.vmem %s1, %s260
      %p262 = pneg %p76
      %p263 = pneg %p73
      %s264 = smul.u32 2, %s22
      %p265 = scmp.lt.s32.totalorder %s264, 3
      %s266 = scalar_select %p265, %s264, 3
      %p267 = scmp.lt.s32.totalorder %s21, 0
      %s268 = scalar_select %p267, %s21, 0
      %s269 = sadd.s32 %s268, %s266
      %s270 = smul.addr %s269, 8
      %s271 = scalar_lea.vmem %s2, %s270
      %p272 = pneg %p104
      %p273 = pneg %p101
      %s274 = smul.u32 2, %s22
      %p275 = scmp.lt.s32.totalorder %s274, 3
      %s276 = scalar_select %p275, %s274, 3
      %p277 = scmp.lt.s32.totalorder %s21, 0
      %s278 = scalar_select %p277, %s21, 0
      %s279 = sadd.s32 %s278, %s276
      %s280 = smul.addr %s279, 8
      %s281 = scalar_lea.vmem %s3, %s280
      %p282 = pneg %p132
      %p283 = pneg %p129
      %p284 = pneg %p160
      %p285 = pneg %p157
      %s286 = smul.u32 2, %s22
      %p287 = scmp.lt.s32.totalorder %s286, 3
      %s288 = scalar_select %p287, %s286, 3
      %p289 = scmp.lt.s32.totalorder %s21, 0
      %s290 = scalar_select %p289, %s21, 0
      %s291 = sadd.s32 %s290, %s288
      %s292 = smul.addr %s291, 8
      %s293 = scalar_lea.vmem %s4, %s292
      %p294 = pneg %p188
      %p295 = pneg %p185
      %s296 = smul.u32 2, %s22
      %p297 = scmp.lt.s32.totalorder %s296, 3
      %s298 = scalar_select %p297, %s296, 3
      %p299 = scmp.lt.s32.totalorder %s21, 0
      %s300 = scalar_select %p299, %s21, 0
      %s301 = sadd.s32 %s300, %s298
      %s302 = smul.addr %s301, 8
      %s303 = scalar_lea.vmem %s5, %s302
      %p304 = scmp.lt.s32.totalorder %s21, 0
      %s305 = scalar_select %p304, %s21, 0
      %s306 = smul.addr %s305, 8
      %s307 = scalar_lea.vmem %s0, %s306
      %p308 = scmp.lt.s32.totalorder %s21, 0
      %s309 = scalar_select %p308, %s21, 0
      %s310 = smul.addr %s309, 8
      %s311 = scalar_lea.vmem %s1, %s310
      %s312 = smul.u32 2, %s22
      %p313 = scmp.lt.s32.totalorder %s312, 3
      %s314 = scalar_select %p313, %s312, 3
      %p315 = scmp.lt.s32.totalorder %s21, 0
      %s316 = scalar_select %p315, %s21, 0
      %s317 = sadd.s32 %s316, %s314
      %s318 = smul.addr %s317, 8
      %s319 = scalar_lea.vmem %s2, %s318
      %s320 = smul.u32 2, %s22
      %s321 = smul.u32 2, %s22
      %p322 = scmp.lt.s32.totalorder %s321, 3
      %s323 = scalar_select %p322, %s321, 3
      %p324 = scmp.lt.s32.totalorder %s21, 0
      %s325 = scalar_select %p324, %s21, 0
      %s326 = sadd.s32 %s325, %s323
      %s327 = smul.addr %s326, 8
      %s328 = scalar_lea.vmem %s3, %s327
      %s329 = smul.u32 2, %s22
      %s330 = smul.u32 2, %s22
      %p331 = scmp.lt.s32.totalorder %s330, 3
      %s332 = scalar_select %p331, %s330, 3
      %p333 = scmp.lt.s32.totalorder %s21, 0
      %s334 = scalar_select %p333, %s21, 0
      %s335 = sadd.s32 %s334, %s332
      %s336 = smul.addr %s335, 8
      %s337 = scalar_lea.vmem %s4, %s336
      %s338 = smul.u32 2, %s22
      %s339 = smul.u32 2, %s22
      %p340 = scmp.lt.s32.totalorder %s339, 3
      %s341 = scalar_select %p340, %s339, 3
      %p342 = scmp.lt.s32.totalorder %s21, 0
      %s343 = scalar_select %p342, %s21, 0
      %s344 = sadd.s32 %s343, %s341
      %s345 = smul.addr %s344, 8
      %s346 = scalar_lea.vmem %s5, %s345
      %s347 = smul.u32 2, %s22
      %v348 = vld [vmem:[%s307] sm:$0xff]
      %v349 = vld [vmem:[%s311] sm:$0xff]
      %v350 = vlaneseq
      %v351 = vand.u32 %v350, 127
      %vm352 = vcmp.lt.s32.totalorder %v351, 0
      %v353 = vsub.s32 0, %v351
      %v354 = vsel %vm352, %v353, %v351
      %v355 = vshrl.u32 %v354, 1
      %v356 = vand.u32 %v354, 1
      %v357 = vsub.s32 0, %v356
      %v358 = vsel %vm352, %v357, %v356
      %vm359 = vcmp.ne.s32.totalorder %v358, 0
      %vm360 = vcmp.lt.s32.totalorder %v358, 0
      %vm361 = vmand %vm360, %vm359
      %v362 = vadd.s32 %v358, 2
      %v363 = vsel %vm361, %v362, %v358
      %vm364 = vcmp.eq.s32.totalorder %v363, 0
      %v365 = vld [vmem:[%s319] sm:$0xff]
      %366 = vrot.lane.b32.xlu0 %v365, 127
      %v367 = vpop.permute.xlu0 %366
      %368 = vrot.lane.b32.xlu0 %v365, 1
      %v369 = vpop.permute.xlu0 %368
      %v370 = vsel %vm364, %v367, %v369
      %v371 = vmul.f32 %v365, %v348
      %v372 = vmul.f32 %v370, %v349
      %v373 = vadd.f32 %v371, %v372
      %374 = vst [vmem:[%s337] sm:$0xff] %v373
      %v375 = vld [vmem:[%s328] sm:$0xff]
      %376 = vrot.lane.b32.xlu0 %v375, 127
      %v377 = vpop.permute.xlu0 %376
      %378 = vrot.lane.b32.xlu0 %v375, 1
      %v379 = vpop.permute.xlu0 %378
      %v380 = vsel %vm364, %v377, %v379
      %v381 = vmul.f32 %v375, %v348
      %v382 = vmul.f32 %v380, %v349
      %v383 = vadd.f32 %v381, %v382
      %384 = vst [vmem:[%s346] sm:$0xff] %v383
      %s385 = scalar_lea.vmem %s319, 8
      %v386 = vld [vmem:[%s385] sm:$0xff]
      %387 = vrot.lane.b32.xlu0 %v386, 127
      %v388 = vpop.permute.xlu0 %387
      %389 = vrot.lane.b32.xlu0 %v386, 1
      %v390 = vpop.permute.xlu0 %389
      %v391 = vsel %vm364, %v388, %v390
      %v392 = vmul.f32 %v386, %v348
      %v393 = vmul.f32 %v391, %v349
      %v394 = vadd.f32 %v392, %v393
      %s395 = scalar_lea.vmem %s337, 8
      %396 = vst [vmem:[%s395] sm:$0xff] %v394
      %s397 = scalar_lea.vmem %s328, 8
      %v398 = vld [vmem:[%s397] sm:$0xff]
      %399 = vrot.lane.b32.xlu0 %v398, 127
      %v400 = vpop.permute.xlu0 %399
      %401 = vrot.lane.b32.xlu0 %v398, 1
      %v402 = vpop.permute.xlu0 %401
      %v403 = vsel %vm364, %v400, %v402
      %v404 = vmul.f32 %v398, %v348
      %v405 = vmul.f32 %v403, %v349
      %v406 = vadd.f32 %v404, %v405
      %s407 = scalar_lea.vmem %s346, 8
      %408 = vst [vmem:[%s407] sm:$0xff] %v406
      %s409 = smul.u32 2, %s22
      %p410 = scmp.lt.s32.totalorder %s409, 3
      %s411 = scalar_select %p410, %s409, 3
      %p412 = scmp.lt.s32.totalorder %s21, 0
      %s413 = scalar_select %p412, %s21, 0
      %s414 = sadd.s32 %s413, %s411
      %s415 = smul.addr %s414, 8
      %s416 = scalar_lea.vmem %s4, %s415
      %s417 = smul.u32 2, %s22
      %p418 = scmp.lt.s32.totalorder %s417, 3
      %s419 = scalar_select %p418, %s417, 3
      %p420 = scmp.lt.s32.totalorder %s21, 0
      %s421 = scalar_select %p420, %s21, 0
      %s422 = sadd.s32 %s421, %s419
      %s423 = smul.addr %s422, 8
      %s424 = scalar_lea.vmem %s5, %s423
      // Predicated region
      $region37: #{rope_forward.1} parent=35 // pred_check
        %p425 = pneg %p157
      $region38: #{rope_forward.1} parent=35 // pred_check_branch
        %427 = sbr.rel (%p425) target = $region40
      $region39: #{rope_forward.1} parent=35 // pred_region
        %s428 = smul.u32 2, %s22
      $region40: #{rope_forward.1} parent=35 // pred_fallthru
        _
      // Predicated region
      $region41: #{rope_forward.1} parent=35 // pred_check
        %p429 = pneg %p185
      $region42: #{rope_forward.1} parent=35 // pred_check_branch
        %431 = sbr.rel (%p429) target = $region44
      $region43: #{rope_forward.1} parent=35 // pred_region
        %s432 = smul.u32 2, %s22
      $region44: #{rope_forward.1} parent=35 // pred_fallthru
        _
    $region36: #{rope_forward.1} parent=5 // pred_fallthru
      _
    %p433 = scmp.le.s32.totalorder 2, %s12
    // Predicated region
    $region45: #{rope_forward.1} parent=5 // pred_check
      %p434 = pneg %p433
    $region46: #{rope_forward.1} parent=5 // pred_check_branch
      %436 = sbr.rel (%p434) target = $region48
    $region47: #{rope_forward.1} parent=5 // pred_region
      %s437 = ssub.s32 %s12, 2
      // Predicated region
      $region49: #{rope_forward.1} parent=47 // pred_check
        %p438 = pneg %p163
      $region50: #{rope_forward.1} parent=47 // pred_check_branch
        %440 = sbr.rel (%p438) target = $region52
      $region51: #{rope_forward.1} parent=47 // pred_region
        %s441 = smul.u32 2, %s24
        %p442 = scmp.lt.s32.totalorder %s441, 3
        %s443 = scalar_select %p442, %s441, 3
        %p444 = scmp.lt.s32.totalorder %s23, 0
        %s445 = scalar_select %p444, %s23, 0
        %s446 = sadd.s32 %s445, %s443
        %s447 = smul.addr %s446, 8
        %s448 = scalar_lea.vmem %s4, %s447
      $region52: #{rope_forward.1} parent=47 // pred_fallthru
        _
      // Predicated region
      $region53: #{rope_forward.1} parent=47 // pred_check
        %p449 = pneg %p191
      $region54: #{rope_forward.1} parent=47 // pred_check_branch
        %451 = sbr.rel (%p449) target = $region56
      $region55: #{rope_forward.1} parent=47 // pred_region
        %s452 = smul.u32 2, %s24
        %p453 = scmp.lt.s32.totalorder %s452, 3
        %s454 = scalar_select %p453, %s452, 3
        %p455 = scmp.lt.s32.totalorder %s23, 0
        %s456 = scalar_select %p455, %s23, 0
        %s457 = sadd.s32 %s456, %s454
        %s458 = smul.addr %s457, 8
        %s459 = scalar_lea.vmem %s5, %s458
      $region56: #{rope_forward.1} parent=47 // pred_fallthru
        _
    $region48: #{rope_forward.1} parent=5 // pred_fallthru
      _
  $region6: #{rope_forward.1} parent=0 // loop_footer
    %s16 = sadd.s32 1, %s12
  $region7: #{rope_forward.1} parent=0 // loop_footer_branch
    %11 = sbr.rel target = $region3
  $region8: #{rope_forward.1} parent=0 // loop_exit
    _

</llo_original>
